<compile_context>
chip_gen: v5e
topology: v5e:2x2
jax: 0.10.0
libtpu: 0.0.40
codegen_flags: <defaults>
</compile_context>

<pallas_src>
import math
import numpy as np
import jax
import jax.numpy as jnp
from jax.experimental import pallas as pl
from jax.experimental.pallas import tpu as pltpu


# ----------------------------- parameter glue -----------------------------

def _hz_to_mel_slaney(f):
    f_sp = 200.0 / 3.0
    min_log_hz = 1000.0
    min_log_mel = min_log_hz / f_sp
    logstep = math.log(6.4) / 27.0
    f = np.asarray(f, dtype=np.float64)
    lin = f / f_sp
    logm = min_log_mel + np.log(np.maximum(f, 1e-10) / min_log_hz) / logstep
    return np.where(f >= min_log_hz, logm, lin)


def _mel_to_hz_slaney(m):
    f_sp = 200.0 / 3.0
    min_log_hz = 1000.0
    min_log_mel = min_log_hz / f_sp
    logstep = math.log(6.4) / 27.0
    m = np.asarray(m, dtype=np.float64)
    lin = m * f_sp
    logf = min_log_hz * np.exp(logstep * (m - min_log_mel))
    return np.where(m >= min_log_mel, logf, lin)


def slaney_mel_filterbank(sample_rate, n_fft, n_mels, f_min=20.0):
    """Replicates torchaudio.functional.melscale_fbanks(mel_scale='slaney', norm='slaney')."""
    n_freqs = n_fft // 2 + 1
    f_max = sample_rate / 2.0
    all_freqs = np.linspace(0.0, f_max, n_freqs)

    m_min = _hz_to_mel_slaney(f_min)
    m_max = _hz_to_mel_slaney(f_max)
    m_pts = np.linspace(m_min, m_max, n_mels + 2)
    f_pts = _mel_to_hz_slaney(m_pts)

    f_diff = f_pts[1:] - f_pts[:-1]                       # (n_mels + 1,)
    slopes = f_pts[None, :] - all_freqs[:, None]          # (n_freqs, n_mels + 2)
    down = -slopes[:, :-2] / f_diff[:-1]
    up = slopes[:, 2:] / f_diff[1:]
    fb = np.maximum(0.0, np.minimum(down, up))            # (n_freqs, n_mels)

    enorm = 2.0 / (f_pts[2:n_mels + 2] - f_pts[:n_mels])  # slaney norm
    fb = fb * enorm[None, :]
    return fb.astype(np.float32)


def dft_basis(n_fft):
    """Real-input one-sided DFT as two matmuls: cos/sin bases of shape (n_fft, n_freqs)."""
    n_freqs = n_fft // 2 + 1
    n = np.arange(n_fft, dtype=np.float64)[:, None]
    k = np.arange(n_freqs, dtype=np.float64)[None, :]
    ang = 2.0 * np.pi * n * k / n_fft
    return np.cos(ang).astype(np.float32), np.sin(ang).astype(np.float32)


def hann_window_periodic(n_fft):
    n = np.arange(n_fft, dtype=np.float64)
    return (0.5 - 0.5 * np.cos(2.0 * np.pi * n / n_fft)).astype(np.float32)


# ------------------------------ Pallas kernel ------------------------------

def _make_logmel_call(R, n_fft, Fp, Mp, eps, row_tile, vmem_limit_bytes):
    n_steps = R // row_tile

    def kernel(fr_ref, w_ref, m_ref, o_ref):
        # Single fused MXU pass: (rt, n_fft)bf16 @ (n_fft, 2*Fp)bf16 -> [re | im] f32.
        # The Hann window is already folded into w_ref.
        y = jnp.dot(fr_ref[...], w_ref[...], preferred_element_type=jnp.float32)
        re = y[:, :Fp]                  # Fp is a multiple of 128 -> aligned lane slice
        im = y[:, Fp:]
        mag = jnp.sqrt(re * re + im * im)                               # power=1 magnitude
        mel = jnp.dot(mag, m_ref[...], preferred_element_type=jnp.float32)
        o_ref[...] = jnp.log(jnp.maximum(mel, eps))                     # clamp(min=eps) -> log

    # Streamed frames: deepen the pipeline when there are enough grid steps to profit.
    if n_steps >= 4:
        frames_spec = pl.BlockSpec((row_tile, n_fft), lambda i: (i, 0),
                                   pipeline_mode=pl.Buffered(3))
    else:
        frames_spec = pl.BlockSpec((row_tile, n_fft), lambda i: (i, 0))

    return pl.pallas_call(
        kernel,
        out_shape=jax.ShapeDtypeStruct((R, Mp), jnp.float32),
        grid_spec=pltpu.PrefetchScalarGridSpec(
            num_scalar_prefetch=0,
            grid=(n_steps,),
            in_specs=[
                frames_spec,                                         # frames (bf16, streamed)
                pl.BlockSpec((n_fft, 2 * Fp), lambda i: (0, 0)),     # windowed [cos|sin] (bf16)
                pl.BlockSpec((Fp, Mp), lambda i: (0, 0)),            # mel filterbank (f32)
            ],
            # Lane-dense output (Mp multiple of 128) -> unmasked vector stores.
            out_specs=pl.BlockSpec((row_tile, Mp), lambda i: (i, 0)),
        ),
        compiler_params=pltpu.CompilerParams(
            dimension_semantics=("parallel",),
            vmem_limit_bytes=vmem_limit_bytes),
    )


def _choose_row_tile(rows, max_tile=256):
    """Biggest tile that still leaves >= 2 grid steps (so both v7x TCs get work).
    Multiple of 16 so bf16 sublane packing is happy."""
    if rows >= 2 * max_tile:
        return max_tile
    half = (rows + 1) // 2
    return max(16, ((half + 15) // 16) * 16)


def log_melspec(x, sample_rate, n_fft, n_mels, hop_length, eps=1e-5, max_row_tile=256):
    """x: (batch, samples) float32 -> (batch, n_mels, n_frames) float32."""
    B, n_samples = x.shape
    n_freqs = n_fft // 2 + 1
    pad = n_fft // 2

    # Parameters (deterministic, derived analytically as in torchaudio).
    window = hann_window_periodic(n_fft)                                # (n_fft,)
    cos_np, sin_np = dft_basis(n_fft)                                   # (n_fft, n_freqs)
    mel_np = slaney_mel_filterbank(sample_rate, n_fft, n_mels)          # (n_freqs, n_mels)

    # Pad freq / mel dims to lane-friendly multiples of 128 (zero-padded => no effect).
    Fp = ((n_freqs + 127) // 128) * 128
    Mp = ((n_mels + 127) // 128) * 128

    # Fold the Hann window into the DFT bases and fuse cos|sin into one weight matrix.
    wcos = np.pad(window[:, None] * cos_np, ((0, 0), (0, Fp - n_freqs)))
    wsin = np.pad(window[:, None] * sin_np, ((0, 0), (0, Fp - n_freqs)))
    basis = jnp.asarray(
        np.concatenate([wcos, wsin], axis=1).astype(np.float32)).astype(jnp.bfloat16)
    mel_fb = jnp.asarray(np.pad(mel_np, ((0, Fp - n_freqs), (0, Mp - n_mels))))  # f32

    # STFT framing (center=True, reflect padding). bf16 halves HBM bytes for frames.
    xp = jnp.pad(x, ((0, 0), (pad, pad)), mode="reflect").astype(jnp.bfloat16)
    padded_len = n_samples + 2 * pad
    n_frames = 1 + (padded_len - n_fft) // hop_length

    if n_fft % hop_length == 0:
        # Gather-free framing: hop | n_fft, so each frame is a concat of shifted
        # non-overlapping hop-sized chunks (plain slices + concat, no gather op).
        r = n_fft // hop_length
        n_chunks = n_frames + r - 1
        y = xp[:, :n_chunks * hop_length].reshape(B, n_chunks, hop_length)
        frames = jnp.concatenate([y[:, k:k + n_frames, :] for k in range(r)], axis=-1)
    else:
        idx = (jnp.arange(n_frames)[:, None] * hop_length
               + jnp.arange(n_fft)[None, :])                            # (T, n_fft)
        frames = xp[:, idx]
    frames = frames.reshape(B * n_frames, n_fft)
    # TODO(synk): move framing fully inside the kernel (manual DMA of overlapping audio
    # windows from HBM) to cut streamed HBM bytes by n_fft/hop.

    # Pad rows to a multiple of the row tile.
    rows = B * n_frames
    row_tile = _choose_row_tile(rows, max_row_tile)
    R = ((rows + row_tile - 1) // row_tile) * row_tile
    frames_p = jnp.pad(frames, ((0, R - rows), (0, 0)))

    # VMEM budget: multi-buffered operands + f32 intermediates, with headroom.
    est = (3 * (row_tile * n_fft * 2            # frames tile (bf16), up to 3-deep
                + row_tile * Mp * 4)            # output tile (f32)
           + 2 * (n_fft * 2 * Fp * 2            # fused basis (bf16)
                  + Fp * Mp * 4)                # mel fb (f32)
           + row_tile * (3 * Fp + Mp) * 4)      # y / mag / mel intermediates
    vmem_limit = int(min(64 * 1024 * 1024, max(32 * 1024 * 1024, 4 * est)))

    call = _make_logmel_call(R, n_fft, Fp, Mp, float(eps), row_tile, vmem_limit)
    out = call(frames_p, basis, mel_fb)                                 # (R, Mp)

    out = out[:rows, :n_mels].reshape(B, n_frames, n_mels)
    return jnp.transpose(out, (0, 2, 1))                                # (B, n_mels, T)


# ---------------------------------- main -----------------------------------

if __name__ == "__main__":
    sample_rate, n_fft, n_mels, hop_length = 16000, 256, 32, 64
    B, n_samples = 2, 1024

    key = jax.random.PRNGKey(0)
    x = jax.random.normal(key, (B, n_samples), dtype=jnp.float32)

    out = log_melspec(x, sample_rate, n_fft, n_mels, hop_length)
    out = jax.block_until_ready(out)

    # Pure-JAX f32 reference of the same math (unpadded), for a sanity check.
    n_freqs = n_fft // 2 + 1
    pad = n_fft // 2
    win = jnp.asarray(hann_window_periodic(n_fft))
    cos_np, sin_np = dft_basis(n_fft)
    mel_np = slaney_mel_filterbank(sample_rate, n_fft, n_mels)
    xp = jnp.pad(x, ((0, 0), (pad, pad)), mode="reflect")
    n_frames = 1 + (n_samples + 2 * pad - n_fft) // hop_length
    idx = jnp.arange(n_frames)[:, None] * hop_length + jnp.arange(n_fft)[None, :]
    fr = xp[:, idx] * win                                               # (B, T, n_fft)
    re = jnp.einsum("btn,nf->btf", fr, jnp.asarray(cos_np))
    im = jnp.einsum("btn,nf->btf", fr, jnp.asarray(sin_np))
    mag = jnp.sqrt(re * re + im * im)
    mel = jnp.einsum("btf,fm->btm", mag, jnp.asarray(mel_np))
    ref = jnp.transpose(jnp.log(jnp.maximum(mel, 1e-5)), (0, 2, 1))

    assert out.shape == (B, n_mels, n_frames), out.shape
    # bf16 frames/basis with f32 accumulation vs. full-f32 reference:
    # relative mel error ~0.5%, log-domain abs error well below 5e-2.
    max_err = float(jnp.max(jnp.abs(out - ref)))
    assert max_err < 5e-2, f"max abs error too large: {max_err}"

    print("KERNEL_OK")
</pallas_src>

<mosaic_0001>
module attributes {stable_mosaic.version = 11 : i64} {
  func.func @kernel(%arg0: i32, %arg1: memref<32x256xbf16, #tpu.memory_space<vmem>>, %arg2: memref<256x512xbf16, #tpu.memory_space<vmem>>, %arg3: memref<256x128xf32, #tpu.memory_space<vmem>>, %arg4: memref<32x128xf32, #tpu.memory_space<vmem>>) attributes {dimension_semantics = [#tpu.dimension_semantics<parallel>], iteration_bounds = array<i64: 2>, scalar_prefetch = 0 : i64, scratch_operands = 0 : i64, tpu.core_type = #tpu.core_type<tc>, window_params = [{transform_indices = @transform_0, window_bounds = array<i64: 32, 256>}, {pipeline_mode = #tpu.pipeline_mode<synchronous>, transform_indices = @transform_1, window_bounds = array<i64: 256, 512>}, {pipeline_mode = #tpu.pipeline_mode<synchronous>, transform_indices = @transform_2, window_bounds = array<i64: 256, 128>}, {transform_indices = @transform_3, window_bounds = array<i64: 32, 128>}]} {
    %c0 = arith.constant 0 : index
    %c0_0 = arith.constant 0 : index
    %0 = vector.load %arg1[%c0, %c0_0] : memref<32x256xbf16, #tpu.memory_space<vmem>>, vector<32x256xbf16>
    %c0_1 = arith.constant 0 : index
    %c0_2 = arith.constant 0 : index
    %1 = vector.load %arg2[%c0_1, %c0_2] : memref<256x512xbf16, #tpu.memory_space<vmem>>, vector<256x512xbf16>
    %cst = arith.constant dense<0.000000e+00> : vector<32x512xf32>
    %2 = tpu.matmul %0, %1, %cst {dimension_numbers = #tpu.dot_dimension_numbers<[1], [0], [0], [1], [0, 0, 1, 1], [], []>} : vector<32x256xbf16>, vector<256x512xbf16>, vector<32x512xf32> -> vector<32x512xf32>
    %3 = vector.extract_strided_slice %2 {offsets = [0, 0], sizes = [32, 256], strides = [1, 1]} : vector<32x512xf32> to vector<32x256xf32>
    %4 = vector.extract_strided_slice %2 {offsets = [0, 256], sizes = [32, 256], strides = [1, 1]} : vector<32x512xf32> to vector<32x256xf32>
    %5 = arith.mulf %3, %3 : vector<32x256xf32>
    %6 = arith.mulf %4, %4 : vector<32x256xf32>
    %7 = arith.addf %5, %6 : vector<32x256xf32>
    %8 = math.sqrt %7 : vector<32x256xf32>
    %c0_3 = arith.constant 0 : index
    %c0_4 = arith.constant 0 : index
    %9 = vector.load %arg3[%c0_3, %c0_4] : memref<256x128xf32, #tpu.memory_space<vmem>>, vector<256x128xf32>
    %cst_5 = arith.constant dense<0.000000e+00> : vector<32x128xf32>
    %10 = tpu.matmul %8, %9, %cst_5 {dimension_numbers = #tpu.dot_dimension_numbers<[1], [0], [0], [1], [0, 0, 1, 1], [], []>} : vector<32x256xf32>, vector<256x128xf32>, vector<32x128xf32> -> vector<32x128xf32>
    %cst_6 = arith.constant 9.99999974E-6 : f32
    %11 = vector.broadcast %cst_6 : f32 to vector<32x128xf32>
    %12 = arith.maximumf %10, %11 : vector<32x128xf32>
    %13 = math.log %12 : vector<32x128xf32>
    %c0_7 = arith.constant 0 : index
    %c0_8 = arith.constant 0 : index
    %14 = vector.load %arg4[%c0_7, %c0_8] : memref<32x128xf32, #tpu.memory_space<vmem>>, vector<32x128xf32>
    tpu.vector_store %arg4[%c0_7, %c0_8], %13 {strides = array<i32>} : memref<32x128xf32, #tpu.memory_space<vmem>>, vector<32x128xf32>,
    return
  }
  func.func @transform_0(%arg0: i32) -> (i32, i32) {
    %c0_i32 = arith.constant 0 : i32
    %c0_i32_0 = arith.constant 0 : i32
    return %arg0, %c0_i32 : i32, i32
  }
  func.func @transform_1(%arg0: i32) -> (i32, i32) {
    %c0_i32 = arith.constant 0 : i32
    %c0_i32_0 = arith.constant 0 : i32
    %c0_i32_1 = arith.constant 0 : i32
    return %c0_i32, %c0_i32_0 : i32, i32
  }
  func.func @transform_2(%arg0: i32) -> (i32, i32) {
    %c0_i32 = arith.constant 0 : i32
    %c0_i32_0 = arith.constant 0 : i32
    %c0_i32_1 = arith.constant 0 : i32
    return %c0_i32, %c0_i32_0 : i32, i32
  }
  func.func @transform_3(%arg0: i32) -> (i32, i32) {
    %c0_i32 = arith.constant 0 : i32
    %c0_i32_0 = arith.constant 0 : i32
    return %arg0, %c0_i32 : i32, i32
  }
}

</mosaic_0001>

<llo_original>
// kernel: tpu_custom_call.1
$region0: #{tpu_custom_call.1}
  #allocation0 [shape = 'u32[]', space=smem, size = 0x4, offset = 0x4, fixed_abs, tag = 'smem constant byte address 0x4 - core index']
  #allocation1 [shape = 'u32[72,128]{1,0:T(1,128)}', space=vmem, size = 0x9000, scoped, tag = 'internal scratch']
  %s0 = inlined_call_operand.hbm [shape: bf16[64,256], index: 0, kind: input, shape index: {}]
  %s1 = inlined_call_operand.hbm [shape: bf16[256,512], index: 1, kind: input, shape index: {}]
  %s2 = inlined_call_operand.hbm [shape: f32[256,128], index: 2, kind: input, shape index: {}]
  %s3 = inlined_call_operand.hbm [shape: f32[64,128], index: 3, kind: output, shape index: {}]
  %s4 = sld [smem:[#allocation0]]
  $region57: #{tpu_custom_call.1} parent=0
    _
  %s6 = ssub.s32 1, %s4
  %s7 = scalar_select 0, %s6, %s4
  $region1: #{tpu_custom_call.1} parent=0
    #allocation2 [shape = 'u8[32768]{0}', space=vmem, size = 0x8000, scoped, tag = 'input window, operand 0']
    #allocation3 [shape = 's32[2]{0}', space=sflag, size = 0x8, scoped, tag = 'scoped memory for tpu_custom_call.1']
    #allocation4 [shape = 's32[2]{0}', space=sflag, size = 0x8, scoped, tag = 'scoped memory for tpu_custom_call.1']
    #allocation5 [shape = 'u8[262144]{0}', space=vmem, size = 0x40000, scoped, tag = 'input window, operand 1, single buffered']
    #allocation6 [shape = 's32[1]{0}', space=sflag, size = 0x4, scoped, tag = 'scoped memory for tpu_custom_call.1']
    #allocation7 [shape = 'u8[131072]{0}', space=vmem, size = 0x20000, scoped, tag = 'input window, operand 2, single buffered']
    #allocation8 [shape = 'u8[32768]{0}', space=vmem, size = 0x8000, scoped, tag = 'output window, operand 0']
    %8 = vsyncpa [#allocation3], 0
    %s9 = scalar_lea.sflag [#allocation3], 1
    %10 = vsyncpa %s9, 0
    %11 = vsyncpa [#allocation6], 0
    %12 = vsyncpa [#allocation4], 0
    %s13 = scalar_lea.sflag [#allocation4], 1
    %14 = vsyncpa %s13, 0
    loop: start=0, step=1, limit=4
    $region2: #{tpu_custom_call.1} parent=1 // loop_pre_header
      _
    $region3: #{tpu_custom_call.1} parent=1 // loop_header
      %s16 = sphi 0, %s20
      %p17 = scmp.ge.s32.totalorder %s16, 4
      %s26 = sphi 0, %s28
      %s29 = sphi 0, %s26
      %s30 = sphi 0, %s29
      %s46 = sphi 0, %s30
      %s50 = sphi 0, %s50
      %s52 = sphi 0, %s50
      %s53 = sphi 0, %s52
      %s67 = sphi 0, %s53
      %s71 = sphi 0, %s71
      %s73 = sphi 0, %s71
      %s74 = sphi 0, %s73
      %s88 = sphi 0, %s74
      %s94 = sphi 0, %s96
      %s97 = sphi 0, %s94
      %s98 = sphi 0, %s97
      %s114 = sphi 0, %s98
    $region4: #{tpu_custom_call.1} parent=1 // loop_header_branch
      %19 = sbr.rel (%p17) target = $region8
    $region5: #{tpu_custom_call.1} parent=1 // loop_body
      %s21 = ssub.s32 %s16, 1
      %s22 = ssub.s32 %s16, 2
      %s23 = sadd.s32 %s16, 1
      %s24 = ssub.s32 %s16, %s23
      %p25 = scmp.eq.s32.totalorder %s24, 0
      %s27 = sadd.s32 %s26, 1
      %s28 = scalar_select %p25, %s26, %s27
      %p31 = pneg %p25
      %p32 = scmp.eq.s32.totalorder %s16, 1
      %p33 = por %p31, %p32
      %p34 = scmp.ne.s32.totalorder %s26, %s29
      %p35 = scmp.eq.s32.totalorder %s16, 0
      %p36 = por %p34, %p35
      %p37 = scmp.ne.s32.totalorder %s26, %s29
      %p38 = scmp.eq.s32.totalorder %s21, 1
      %p39 = por %p37, %p38
      %p40 = scmp.ne.s32.totalorder %s29, %s30
      %p41 = scmp.eq.s32.totalorder %s21, 0
      %p42 = por %p40, %p41
      %p43 = scmp.ne.s32.totalorder %s29, %s30
      %p44 = scmp.eq.s32.totalorder %s22, 1
      %p45 = por %p43, %p44
      %p47 = scmp.ne.s32.totalorder %s30, %s46
      %p48 = scmp.eq.s32.totalorder %s22, 0
      %p49 = por %p47, %p48
      %s51 = sadd.s32 %s50, 1
      %p54 = scmp.eq.s32.totalorder %s16, 1
      %p55 = scmp.ne.s32.totalorder %s50, %s52
      %p56 = scmp.eq.s32.totalorder %s16, 0
      %p57 = por %p55, %p56
      %p58 = scmp.ne.s32.totalorder %s50, %s52
      %p59 = scmp.eq.s32.totalorder %s21, 1
      %p60 = por %p58, %p59
      %p61 = scmp.ne.s32.totalorder %s52, %s53
      %p62 = scmp.eq.s32.totalorder %s21, 0
      %p63 = por %p61, %p62
      %p64 = scmp.ne.s32.totalorder %s52, %s53
      %p65 = scmp.eq.s32.totalorder %s22, 1
      %p66 = por %p64, %p65
      %p68 = scmp.ne.s32.totalorder %s53, %s67
      %p69 = scmp.eq.s32.totalorder %s22, 0
      %p70 = por %p68, %p69
      %s72 = sadd.s32 %s71, 1
      %p75 = scmp.eq.s32.totalorder %s16, 1
      %p76 = scmp.ne.s32.totalorder %s71, %s73
      %p77 = scmp.eq.s32.totalorder %s16, 0
      %p78 = por %p76, %p77
      %p79 = scmp.ne.s32.totalorder %s71, %s73
      %p80 = scmp.eq.s32.totalorder %s21, 1
      %p81 = por %p79, %p80
      %p82 = scmp.ne.s32.totalorder %s73, %s74
      %p83 = scmp.eq.s32.totalorder %s21, 0
      %p84 = por %p82, %p83
      %p85 = scmp.ne.s32.totalorder %s73, %s74
      %p86 = scmp.eq.s32.totalorder %s22, 1
      %p87 = por %p85, %p86
      %p89 = scmp.ne.s32.totalorder %s74, %s88
      %p90 = scmp.eq.s32.totalorder %s22, 0
      %p91 = por %p89, %p90
      %s92 = ssub.s32 %s16, %s23
      %p93 = scmp.eq.s32.totalorder %s92, 0
      %s95 = sadd.s32 %s94, 1
      %s96 = scalar_select %p93, %s94, %s95
      %p99 = pneg %p93
      %p100 = scmp.eq.s32.totalorder %s16, 1
      %p101 = por %p99, %p100
      %p102 = scmp.ne.s32.totalorder %s94, %s97
      %p103 = scmp.eq.s32.totalorder %s16, 0
      %p104 = por %p102, %p103
      %p105 = scmp.ne.s32.totalorder %s94, %s97
      %p106 = scmp.eq.s32.totalorder %s21, 1
      %p107 = por %p105, %p106
      %p108 = scmp.ne.s32.totalorder %s97, %s98
      %p109 = scmp.eq.s32.totalorder %s21, 0
      %p110 = por %p108, %p109
      %p111 = scmp.ne.s32.totalorder %s97, %s98
      %p112 = scmp.eq.s32.totalorder %s22, 1
      %p113 = por %p111, %p112
      %p115 = scmp.ne.s32.totalorder %s98, %s114
      %p116 = scmp.eq.s32.totalorder %s22, 0
      %p117 = por %p115, %p116
      %p118 = scmp.le.s32.totalorder 1, %s16
      %p119 = scmp.lt.s32.totalorder %s16, 3
      %p120 = pnand %p118, %p119
      %p121 = pneg %p120
      // Predicated region
      $region9: #{tpu_custom_call.1} parent=5 // pred_check
        _
      $region10: #{tpu_custom_call.1} parent=5 // pred_check_branch
        %123 = sbr.rel (%p120) target = $region12
      $region11: #{tpu_custom_call.1} parent=5 // pred_region
        %s124 = ssub.s32 %s16, 1
        // Predicated region
        $region13: #{tpu_custom_call.1} parent=11 // pred_check
          %p125 = pneg %p63
        $region14: #{tpu_custom_call.1} parent=11 // pred_check_branch
          %127 = sbr.rel (%p125) target = $region16
        $region15: #{tpu_custom_call.1} parent=11 // pred_region
          %129 = vsyncadd [#allocation6], 0
          %s130 = sshll.u32 %s1, 4
          %s131 = int_to_ptr.hbm [resolvable:$true] %s130
          %s132 = sshll.u32 [#allocation5], 4
          %s133 = int_to_ptr.vmem [resolvable:$true] %s132
          %138 = dma.hbm_to_vmem [thread:$0]  %s131, 8192, %s133, [#allocation6], 256, 256, 16
        $region16: #{tpu_custom_call.1} parent=11 // pred_fallthru
          _
        // Predicated region
        $region17: #{tpu_custom_call.1} parent=11 // pred_check
          %p139 = pneg %p84
        $region18: #{tpu_custom_call.1} parent=11 // pred_check_branch
          %141 = sbr.rel (%p139) target = $region20
        $region19: #{tpu_custom_call.1} parent=11 // pred_region
          %143 = vsyncadd [#allocation6], 0
          %s144 = sshll.u32 %s2, 4
          %s145 = int_to_ptr.hbm [resolvable:$true] %s144
          %s146 = sshll.u32 [#allocation7], 4
          %s147 = int_to_ptr.vmem [resolvable:$true] %s146
          %152 = dma.hbm_to_vmem [thread:$0]  %s145, 4096, %s147, [#allocation6], 128, 128, 8
        $region20: #{tpu_custom_call.1} parent=11 // pred_fallthru
          _
      $region12: #{tpu_custom_call.1} parent=5 // pred_fallthru
        _
      %p153 = scmp.lt.s32.totalorder %s16, 2
      // Predicated region
      $region21: #{tpu_custom_call.1} parent=5 // pred_check
        %p154 = pneg %p153
      $region22: #{tpu_custom_call.1} parent=5 // pred_check_branch
        %156 = sbr.rel (%p154) target = $region24
      $region23: #{tpu_custom_call.1} parent=5 // pred_region
        // Predicated region
        $region25: #{tpu_custom_call.1} parent=23 // pred_check
          %p157 = pneg %p36
        $region26: #{tpu_custom_call.1} parent=23 // pred_check_branch
          %159 = sbr.rel (%p157) target = $region28
        $region27: #{tpu_custom_call.1} parent=23 // pred_region
          %s160 = sand.u32 %s26, 1
          %s161 = scalar_lea.sflag [#allocation3], %s160
          %s162 = sand.u32 %s26, 1
          %s163 = smul.addr %s162, 32
          %s164 = scalar_lea.vmem [#allocation2], %s163
          %s165 = smul.u32 4, %s16
          %167 = vsyncadd %s161, 0
          %s168 = smul.addr %s165, 2
          %s169 = smul.addr %s168, 4
          %s170 = scalar_lea.hbm %s0, %s169
          %s171 = sshll.u32 %s170, 4
          %s172 = int_to_ptr.hbm [resolvable:$true] %s171
          %s173 = sshll.u32 %s164, 4
          %s174 = int_to_ptr.vmem [resolvable:$true] %s173
          %179 = dma.hbm_to_vmem [thread:$0]  %s172, 512, %s174, %s161, 128, 128, 8
        $region28: #{tpu_custom_call.1} parent=23 // pred_fallthru
          _
      $region24: #{tpu_custom_call.1} parent=5 // pred_fallthru
        _
      %p180 = scmp.le.s32.totalorder 1, %s16
      %p181 = scmp.lt.s32.totalorder %s16, 3
      %p182 = pnand %p180, %p181
      %p183 = pneg %p182
      // Predicated region
      $region29: #{tpu_custom_call.1} parent=5 // pred_check
        _
      $region30: #{tpu_custom_call.1} parent=5 // pred_check_branch
        %185 = sbr.rel (%p182) target = $region32
      $region31: #{tpu_custom_call.1} parent=5 // pred_region
        %s186 = ssub.s32 %s16, 1
        %s187 = sand.u32 %s29, 1
        %s188 = scalar_lea.sflag [#allocation3], %s187
        %s189 = sand.u32 %s29, 1
        %s190 = smul.addr %s189, 32
        %s191 = scalar_lea.vmem [#allocation2], %s190
        // Predicated region
        $region33: #{tpu_custom_call.1} parent=31 // pred_check
          %p192 = pneg %p42
        $region34: #{tpu_custom_call.1} parent=31 // pred_check_branch
          %194 = sbr.rel (%p192) target = $region36
        $region35: #{tpu_custom_call.1} parent=31 // pred_region
          %196 = dma.done %s188, 512
        $region36: #{tpu_custom_call.1} parent=31 // pred_fallthru
          _
        // Predicated region
        $region37: #{tpu_custom_call.1} parent=31 // pred_check
          %p197 = pneg %p63
        $region38: #{tpu_custom_call.1} parent=31 // pred_check_branch
          %199 = sbr.rel (%p197) target = $region40
        $region39: #{tpu_custom_call.1} parent=31 // pred_region
          %201 = dma.done [#allocation6], 8192
        $region40: #{tpu_custom_call.1} parent=31 // pred_fallthru
          _
        // Predicated region
        $region41: #{tpu_custom_call.1} parent=31 // pred_check
          %p202 = pneg %p84
        $region42: #{tpu_custom_call.1} parent=31 // pred_check_branch
          %204 = sbr.rel (%p202) target = $region44
        $region43: #{tpu_custom_call.1} parent=31 // pred_region
          %206 = dma.done [#allocation6], 4096
        $region44: #{tpu_custom_call.1} parent=31 // pred_fallthru
          _
        %s207 = sand.u32 %s29, 1
        %s208 = scalar_lea.sflag [#allocation3], %s207
        %s209 = sand.u32 %s29, 1
        %s210 = smul.addr %s209, 32
        %s211 = scalar_lea.vmem [#allocation2], %s210
        %p212 = pneg %p42
        %p213 = pneg %p39
        %p214 = pneg %p63
        %p215 = pneg %p60
        %p216 = pneg %p84
        %p217 = pneg %p81
        %p218 = pneg %p110
        %p219 = pneg %p107
        %s220 = sand.u32 %s97, 1
        %s221 = scalar_lea.sflag [#allocation4], %s220
        %s222 = sand.u32 %s97, 1
        %s223 = smul.addr %s222, 32
        %s224 = scalar_lea.vmem [#allocation8], %s223
        %s225 = smul.u32 4, %s21
        %s226 = smul.u32 4, %s21
        %v227 = vld [vmem:[%s191] sm:$0xff]
        %v228 = vld [vmem:[%s191 + $0x8] sm:$0xff]
        %v229 = vld [vmem:[%s191 + $0x10] sm:$0xff]
        %v230 = vld [vmem:[%s191 + $0x18] sm:$0xff]
        %v231 = vld [vmem:[#allocation5] sm:$0xff]
        %v232 = vld [vmem:[#allocation5 + $0x8] sm:$0xff]
        %v233 = vld [vmem:[#allocation5 + $0x10] sm:$0xff]
        %v234 = vld [vmem:[#allocation5 + $0x18] sm:$0xff]
        %v235 = vld [vmem:[#allocation5 + $0x20] sm:$0xff]
        %v236 = vld [vmem:[#allocation5 + $0x28] sm:$0xff]
        %v237 = vld [vmem:[#allocation5 + $0x30] sm:$0xff]
        %v238 = vld [vmem:[#allocation5 + $0x38] sm:$0xff]
        %v239 = vld [vmem:[#allocation5 + $0x40] sm:$0xff]
        %v240 = vld [vmem:[#allocation5 + $0x48] sm:$0xff]
        %v241 = vld [vmem:[#allocation5 + $0x50] sm:$0xff]
        %v242 = vld [vmem:[#allocation5 + $0x58] sm:$0xff]
        %v243 = vld [vmem:[#allocation5 + $0x60] sm:$0xff]
        %v244 = vld [vmem:[#allocation5 + $0x68] sm:$0xff]
        %v245 = vld [vmem:[#allocation5 + $0x70] sm:$0xff]
        %v246 = vld [vmem:[#allocation5 + $0x78] sm:$0xff]
        %v247 = vld [vmem:[#allocation5 + $0x80] sm:$0xff]
        %v248 = vld [vmem:[#allocation5 + $0x88] sm:$0xff]
        %v249 = vld [vmem:[#allocation5 + $0x90] sm:$0xff]
        %v250 = vld [vmem:[#allocation5 + $0x98] sm:$0xff]
        %v251 = vld [vmem:[#allocation5 + $0xa0] sm:$0xff]
        %v252 = vld [vmem:[#allocation5 + $0xa8] sm:$0xff]
        %v253 = vld [vmem:[#allocation5 + $0xb0] sm:$0xff]
        %v254 = vld [vmem:[#allocation5 + $0xb8] sm:$0xff]
        %v255 = vld [vmem:[#allocation5 + $0xc0] sm:$0xff]
        %v256 = vld [vmem:[#allocation5 + $0xc8] sm:$0xff]
        %v257 = vld [vmem:[#allocation5 + $0xd0] sm:$0xff]
        %v258 = vld [vmem:[#allocation5 + $0xd8] sm:$0xff]
        %v259 = vld [vmem:[#allocation5 + $0xe0] sm:$0xff]
        %v260 = vld [vmem:[#allocation5 + $0xe8] sm:$0xff]
        %v261 = vld [vmem:[#allocation5 + $0xf0] sm:$0xff]
        %v262 = vld [vmem:[#allocation5 + $0xf8] sm:$0xff]
        %v263 = vld [vmem:[#allocation5 + $0x100] sm:$0xff]
        %v264 = vld [vmem:[#allocation5 + $0x108] sm:$0xff]
        %v265 = vld [vmem:[#allocation5 + $0x110] sm:$0xff]
        %v266 = vld [vmem:[#allocation5 + $0x118] sm:$0xff]
        %v267 = vld [vmem:[#allocation5 + $0x120] sm:$0xff]
        %v268 = vld [vmem:[#allocation5 + $0x128] sm:$0xff]
        %v269 = vld [vmem:[#allocation5 + $0x130] sm:$0xff]
        %v270 = vld [vmem:[#allocation5 + $0x138] sm:$0xff]
        %v271 = vld [vmem:[#allocation5 + $0x140] sm:$0xff]
        %v272 = vld [vmem:[#allocation5 + $0x148] sm:$0xff]
        %v273 = vld [vmem:[#allocation5 + $0x150] sm:$0xff]
        %v274 = vld [vmem:[#allocation5 + $0x158] sm:$0xff]
        %v275 = vld [vmem:[#allocation5 + $0x160] sm:$0xff]
        %v276 = vld [vmem:[#allocation5 + $0x168] sm:$0xff]
        %v277 = vld [vmem:[#allocation5 + $0x170] sm:$0xff]
        %v278 = vld [vmem:[#allocation5 + $0x178] sm:$0xff]
        %v279 = vld [vmem:[#allocation5 + $0x180] sm:$0xff]
        %v280 = vld [vmem:[#allocation5 + $0x188] sm:$0xff]
        %v281 = vld [vmem:[#allocation5 + $0x190] sm:$0xff]
        %v282 = vld [vmem:[#allocation5 + $0x198] sm:$0xff]
        %v283 = vld [vmem:[#allocation5 + $0x1a0] sm:$0xff]
        %v284 = vld [vmem:[#allocation5 + $0x1a8] sm:$0xff]
        %v285 = vld [vmem:[#allocation5 + $0x1b0] sm:$0xff]
        %v286 = vld [vmem:[#allocation5 + $0x1b8] sm:$0xff]
        %v287 = vld [vmem:[#allocation5 + $0x1c0] sm:$0xff]
        %v288 = vld [vmem:[#allocation5 + $0x1c8] sm:$0xff]
        %v289 = vld [vmem:[#allocation5 + $0x1d0] sm:$0xff]
        %v290 = vld [vmem:[#allocation5 + $0x1d8] sm:$0xff]
        %v291 = vld [vmem:[#allocation5 + $0x1e0] sm:$0xff]
        %v292 = vld [vmem:[#allocation5 + $0x1e8] sm:$0xff]
        %v293 = vld [vmem:[#allocation5 + $0x1f0] sm:$0xff]
        %v294 = vld [vmem:[#allocation5 + $0x1f8] sm:$0xff]
        %v299 = vunpack.c.l.b16 %v227
        %v300 = vunpack.c.h.b16 %v227
        %v301 = vunpack.c.l.b16 %v228
        %v302 = vunpack.c.h.b16 %v228
        %v303 = vunpack.c.l.b16 %v229
        %v304 = vunpack.c.h.b16 %v229
        %v305 = vunpack.c.l.b16 %v230
        %v306 = vunpack.c.h.b16 %v230
        %v307 = vpack.c.b16 %v301, %v299
        %v308 = vpack.c.b16 %v302, %v300
        %v309 = vpack.c.b16 %v305, %v303
        %v310 = vpack.c.b16 %v306, %v304
        %v379 = vunpack.c.l.b16 %v231
        %v380 = vunpack.c.h.b16 %v231
        %v381 = vunpack.c.l.b16 %v232
        %v382 = vunpack.c.h.b16 %v232
        %v383 = vunpack.c.l.b16 %v233
        %v384 = vunpack.c.h.b16 %v233
        %v385 = vunpack.c.l.b16 %v234
        %v386 = vunpack.c.h.b16 %v234
        %v387 = vunpack.c.l.b16 %v235
        %v388 = vunpack.c.h.b16 %v235
        %v389 = vunpack.c.l.b16 %v236
        %v390 = vunpack.c.h.b16 %v236
        %v391 = vunpack.c.l.b16 %v237
        %v392 = vunpack.c.h.b16 %v237
        %v393 = vunpack.c.l.b16 %v238
        %v394 = vunpack.c.h.b16 %v238
        %v395 = vunpack.c.l.b16 %v239
        %v396 = vunpack.c.h.b16 %v239
        %v397 = vunpack.c.l.b16 %v240
        %v398 = vunpack.c.h.b16 %v240
        %v399 = vunpack.c.l.b16 %v241
        %v400 = vunpack.c.h.b16 %v241
        %v401 = vunpack.c.l.b16 %v242
        %v402 = vunpack.c.h.b16 %v242
        %v403 = vunpack.c.l.b16 %v243
        %v404 = vunpack.c.h.b16 %v243
        %v405 = vunpack.c.l.b16 %v244
        %v406 = vunpack.c.h.b16 %v244
        %v407 = vunpack.c.l.b16 %v245
        %v408 = vunpack.c.h.b16 %v245
        %v409 = vunpack.c.l.b16 %v246
        %v410 = vunpack.c.h.b16 %v246
        %v411 = vunpack.c.l.b16 %v247
        %v412 = vunpack.c.h.b16 %v247
        %v413 = vunpack.c.l.b16 %v248
        %v414 = vunpack.c.h.b16 %v248
        %v415 = vunpack.c.l.b16 %v249
        %v416 = vunpack.c.h.b16 %v249
        %v417 = vunpack.c.l.b16 %v250
        %v418 = vunpack.c.h.b16 %v250
        %v419 = vunpack.c.l.b16 %v251
        %v420 = vunpack.c.h.b16 %v251
        %v421 = vunpack.c.l.b16 %v252
        %v422 = vunpack.c.h.b16 %v252
        %v423 = vunpack.c.l.b16 %v253
        %v424 = vunpack.c.h.b16 %v253
        %v425 = vunpack.c.l.b16 %v254
        %v426 = vunpack.c.h.b16 %v254
        %v427 = vunpack.c.l.b16 %v255
        %v428 = vunpack.c.h.b16 %v255
        %v429 = vunpack.c.l.b16 %v256
        %v430 = vunpack.c.h.b16 %v256
        %v431 = vunpack.c.l.b16 %v257
        %v432 = vunpack.c.h.b16 %v257
        %v433 = vunpack.c.l.b16 %v258
        %v434 = vunpack.c.h.b16 %v258
        %v435 = vunpack.c.l.b16 %v259
        %v436 = vunpack.c.h.b16 %v259
        %v437 = vunpack.c.l.b16 %v260
        %v438 = vunpack.c.h.b16 %v260
        %v439 = vunpack.c.l.b16 %v261
        %v440 = vunpack.c.h.b16 %v261
        %v441 = vunpack.c.l.b16 %v262
        %v442 = vunpack.c.h.b16 %v262
        %v443 = vunpack.c.l.b16 %v263
        %v444 = vunpack.c.h.b16 %v263
        %v445 = vunpack.c.l.b16 %v264
        %v446 = vunpack.c.h.b16 %v264
        %v447 = vunpack.c.l.b16 %v265
        %v448 = vunpack.c.h.b16 %v265
        %v449 = vunpack.c.l.b16 %v266
        %v450 = vunpack.c.h.b16 %v266
        %v451 = vunpack.c.l.b16 %v267
        %v452 = vunpack.c.h.b16 %v267
        %v453 = vunpack.c.l.b16 %v268
        %v454 = vunpack.c.h.b16 %v268
        %v455 = vunpack.c.l.b16 %v269
        %v456 = vunpack.c.h.b16 %v269
        %v457 = vunpack.c.l.b16 %v270
        %v458 = vunpack.c.h.b16 %v270
        %v459 = vunpack.c.l.b16 %v271
        %v460 = vunpack.c.h.b16 %v271
        %v461 = vunpack.c.l.b16 %v272
        %v462 = vunpack.c.h.b16 %v272
        %v463 = vunpack.c.l.b16 %v273
        %v464 = vunpack.c.h.b16 %v273
        %v465 = vunpack.c.l.b16 %v274
        %v466 = vunpack.c.h.b16 %v274
        %v467 = vunpack.c.l.b16 %v275
        %v468 = vunpack.c.h.b16 %v275
        %v469 = vunpack.c.l.b16 %v276
        %v470 = vunpack.c.h.b16 %v276
        %v471 = vunpack.c.l.b16 %v277
        %v472 = vunpack.c.h.b16 %v277
        %v473 = vunpack.c.l.b16 %v278
        %v474 = vunpack.c.h.b16 %v278
        %v475 = vunpack.c.l.b16 %v279
        %v476 = vunpack.c.h.b16 %v279
        %v477 = vunpack.c.l.b16 %v280
        %v478 = vunpack.c.h.b16 %v280
        %v479 = vunpack.c.l.b16 %v281
        %v480 = vunpack.c.h.b16 %v281
        %v481 = vunpack.c.l.b16 %v282
        %v482 = vunpack.c.h.b16 %v282
        %v483 = vunpack.c.l.b16 %v283
        %v484 = vunpack.c.h.b16 %v283
        %v485 = vunpack.c.l.b16 %v284
        %v486 = vunpack.c.h.b16 %v284
        %v487 = vunpack.c.l.b16 %v285
        %v488 = vunpack.c.h.b16 %v285
        %v489 = vunpack.c.l.b16 %v286
        %v490 = vunpack.c.h.b16 %v286
        %v491 = vunpack.c.l.b16 %v287
        %v492 = vunpack.c.h.b16 %v287
        %v493 = vunpack.c.l.b16 %v288
        %v494 = vunpack.c.h.b16 %v288
        %v495 = vunpack.c.l.b16 %v289
        %v496 = vunpack.c.h.b16 %v289
        %v497 = vunpack.c.l.b16 %v290
        %v498 = vunpack.c.h.b16 %v290
        %v499 = vunpack.c.l.b16 %v291
        %v500 = vunpack.c.h.b16 %v291
        %v501 = vunpack.c.l.b16 %v292
        %v502 = vunpack.c.h.b16 %v292
        %v503 = vunpack.c.l.b16 %v293
        %v504 = vunpack.c.h.b16 %v293
        %v505 = vunpack.c.l.b16 %v294
        %v506 = vunpack.c.h.b16 %v294
        %v507 = vpack.c.b16 %v383, %v379
        %v508 = vpack.c.b16 %v384, %v380
        %v509 = vpack.c.b16 %v385, %v381
        %v510 = vpack.c.b16 %v386, %v382
        %v511 = vpack.c.b16 %v391, %v387
        %v512 = vpack.c.b16 %v392, %v388
        %v513 = vpack.c.b16 %v393, %v389
        %v514 = vpack.c.b16 %v394, %v390
        %v515 = vpack.c.b16 %v399, %v395
        %v516 = vpack.c.b16 %v400, %v396
        %v517 = vpack.c.b16 %v401, %v397
        %v518 = vpack.c.b16 %v402, %v398
        %v519 = vpack.c.b16 %v407, %v403
        %v520 = vpack.c.b16 %v408, %v404
        %v521 = vpack.c.b16 %v409, %v405
        %v522 = vpack.c.b16 %v410, %v406
        %v523 = vpack.c.b16 %v415, %v411
        %v524 = vpack.c.b16 %v416, %v412
        %v525 = vpack.c.b16 %v417, %v413
        %v526 = vpack.c.b16 %v418, %v414
        %v527 = vpack.c.b16 %v423, %v419
        %v528 = vpack.c.b16 %v424, %v420
        %v529 = vpack.c.b16 %v425, %v421
        %v530 = vpack.c.b16 %v426, %v422
        %v531 = vpack.c.b16 %v431, %v427
        %v532 = vpack.c.b16 %v432, %v428
        %v533 = vpack.c.b16 %v433, %v429
        %v534 = vpack.c.b16 %v434, %v430
        %v535 = vpack.c.b16 %v439, %v435
        %v536 = vpack.c.b16 %v440, %v436
        %v537 = vpack.c.b16 %v441, %v437
        %v538 = vpack.c.b16 %v442, %v438
        %v539 = vpack.c.b16 %v447, %v443
        %v540 = vpack.c.b16 %v448, %v444
        %v541 = vpack.c.b16 %v449, %v445
        %v542 = vpack.c.b16 %v450, %v446
        %v543 = vpack.c.b16 %v455, %v451
        %v544 = vpack.c.b16 %v456, %v452
        %v545 = vpack.c.b16 %v457, %v453
        %v546 = vpack.c.b16 %v458, %v454
        %v547 = vpack.c.b16 %v463, %v459
        %v548 = vpack.c.b16 %v464, %v460
        %v549 = vpack.c.b16 %v465, %v461
        %v550 = vpack.c.b16 %v466, %v462
        %v551 = vpack.c.b16 %v471, %v467
        %v552 = vpack.c.b16 %v472, %v468
        %v553 = vpack.c.b16 %v473, %v469
        %v554 = vpack.c.b16 %v474, %v470
        %v555 = vpack.c.b16 %v479, %v475
        %v556 = vpack.c.b16 %v480, %v476
        %v557 = vpack.c.b16 %v481, %v477
        %v558 = vpack.c.b16 %v482, %v478
        %v559 = vpack.c.b16 %v487, %v483
        %v560 = vpack.c.b16 %v488, %v484
        %v561 = vpack.c.b16 %v489, %v485
        %v562 = vpack.c.b16 %v490, %v486
        %v563 = vpack.c.b16 %v495, %v491
        %v564 = vpack.c.b16 %v496, %v492
        %v565 = vpack.c.b16 %v497, %v493
        %v566 = vpack.c.b16 %v498, %v494
        %v567 = vpack.c.b16 %v503, %v499
        %v568 = vpack.c.b16 %v504, %v500
        %v569 = vpack.c.b16 %v505, %v501
        %v570 = vpack.c.b16 %v506, %v502
        %635 = vmatpush.bf16.msra.mxu0 %v535
        %636 = vmatpush.bf16.msra.mxu0 %v531
        %637 = vmatpush.bf16.msra.mxu0 %v527
        %638 = vmatpush.bf16.msra.mxu0 %v523
        %639 = vmatpush.bf16.msra.mxu0 %v519
        %640 = vmatpush.bf16.msra.mxu0 %v515
        %641 = vmatpush.bf16.msra.mxu0 %v511
        %642 = vmatpush.bf16.msra.mxu0 %v507
        %643 = vmatmul.bf16.gmra.mxu0 %v307
        %v644 = vpop.f32.mrf.mxu0
        %v645 = vadd.f32 0.0, %v644
        %v646 = vpop.f32.mrf.mxu0
        %v647 = vadd.f32 0.0, %v646
        %648 = vmatmul.bf16.gmra.mxu0 %v309
        %v649 = vpop.f32.mrf.mxu0
        %v650 = vadd.f32 0.0, %v649
        %v651 = vpop.f32.mrf.mxu0
        %v652 = vadd.f32 0.0, %v651
        %653 = vdwg.mxu0
        %654 = vmatpush.bf16.msra.mxu0 %v567
        %655 = vmatpush.bf16.msra.mxu0 %v563
        %656 = vmatpush.bf16.msra.mxu0 %v559
        %657 = vmatpush.bf16.msra.mxu0 %v555
        %658 = vmatpush.bf16.msra.mxu0 %v551
        %659 = vmatpush.bf16.msra.mxu0 %v547
        %660 = vmatpush.bf16.msra.mxu0 %v543
        %661 = vmatpush.bf16.msra.mxu0 %v539
        %662 = vmatmul.bf16.gmra.mxu0 %v308
        %v663 = vpop.f32.mrf.mxu0
        %v664 = vadd.f32 %v645, %v663
        %v665 = vpop.f32.mrf.mxu0
        %v666 = vadd.f32 %v647, %v665
        %667 = vmatmul.bf16.gmra.mxu0 %v310
        %v668 = vpop.f32.mrf.mxu0
        %v669 = vadd.f32 %v650, %v668
        %v670 = vpop.f32.mrf.mxu0
        %v671 = vadd.f32 %v652, %v670
        %672 = vdwg.mxu0
        %673 = vmatpush.bf16.msra.mxu0 %v536
        %674 = vmatpush.bf16.msra.mxu0 %v532
        %675 = vmatpush.bf16.msra.mxu0 %v528
        %676 = vmatpush.bf16.msra.mxu0 %v524
        %677 = vmatpush.bf16.msra.mxu0 %v520
        %678 = vmatpush.bf16.msra.mxu0 %v516
        %679 = vmatpush.bf16.msra.mxu0 %v512
        %680 = vmatpush.bf16.msra.mxu0 %v508
        %681 = vmatmul.bf16.gmra.mxu0 %v307
        %v682 = vpop.f32.mrf.mxu0
        %v683 = vadd.f32 0.0, %v682
        %v684 = vpop.f32.mrf.mxu0
        %v685 = vadd.f32 0.0, %v684
        %686 = vmatmul.bf16.gmra.mxu0 %v309
        %v687 = vpop.f32.mrf.mxu0
        %v688 = vadd.f32 0.0, %v687
        %v689 = vpop.f32.mrf.mxu0
        %v690 = vadd.f32 0.0, %v689
        %691 = vdwg.mxu0
        %692 = vmatpush.bf16.msra.mxu0 %v568
        %693 = vmatpush.bf16.msra.mxu0 %v564
        %694 = vmatpush.bf16.msra.mxu0 %v560
        %695 = vmatpush.bf16.msra.mxu0 %v556
        %696 = vmatpush.bf16.msra.mxu0 %v552
        %697 = vmatpush.bf16.msra.mxu0 %v548
        %698 = vmatpush.bf16.msra.mxu0 %v544
        %699 = vmatpush.bf16.msra.mxu0 %v540
        %700 = vmatmul.bf16.gmra.mxu0 %v308
        %v701 = vpop.f32.mrf.mxu0
        %v702 = vadd.f32 %v683, %v701
        %v703 = vpop.f32.mrf.mxu0
        %v704 = vadd.f32 %v685, %v703
        %705 = vmatmul.bf16.gmra.mxu0 %v310
        %v706 = vpop.f32.mrf.mxu0
        %v707 = vadd.f32 %v688, %v706
        %v708 = vpop.f32.mrf.mxu0
        %v709 = vadd.f32 %v690, %v708
        %710 = vdwg.mxu0
        %711 = vmatpush.bf16.msra.mxu0 %v537
        %712 = vmatpush.bf16.msra.mxu0 %v533
        %713 = vmatpush.bf16.msra.mxu0 %v529
        %714 = vmatpush.bf16.msra.mxu0 %v525
        %715 = vmatpush.bf16.msra.mxu0 %v521
        %716 = vmatpush.bf16.msra.mxu0 %v517
        %717 = vmatpush.bf16.msra.mxu0 %v513
        %718 = vmatpush.bf16.msra.mxu0 %v509
        %719 = vmatmul.bf16.gmra.mxu0 %v307
        %v720 = vpop.f32.mrf.mxu0
        %v721 = vadd.f32 0.0, %v720
        %v722 = vpop.f32.mrf.mxu0
        %v723 = vadd.f32 0.0, %v722
        %724 = vmatmul.bf16.gmra.mxu0 %v309
        %v725 = vpop.f32.mrf.mxu0
        %v726 = vadd.f32 0.0, %v725
        %v727 = vpop.f32.mrf.mxu0
        %v728 = vadd.f32 0.0, %v727
        %729 = vdwg.mxu0
        %730 = vmatpush.bf16.msra.mxu0 %v569
        %731 = vmatpush.bf16.msra.mxu0 %v565
        %732 = vmatpush.bf16.msra.mxu0 %v561
        %733 = vmatpush.bf16.msra.mxu0 %v557
        %734 = vmatpush.bf16.msra.mxu0 %v553
        %735 = vmatpush.bf16.msra.mxu0 %v549
        %736 = vmatpush.bf16.msra.mxu0 %v545
        %737 = vmatpush.bf16.msra.mxu0 %v541
        %738 = vmatmul.bf16.gmra.mxu0 %v308
        %v739 = vpop.f32.mrf.mxu0
        %v740 = vadd.f32 %v721, %v739
        %v741 = vpop.f32.mrf.mxu0
        %v742 = vadd.f32 %v723, %v741
        %743 = vmatmul.bf16.gmra.mxu0 %v310
        %v744 = vpop.f32.mrf.mxu0
        %v745 = vadd.f32 %v726, %v744
        %v746 = vpop.f32.mrf.mxu0
        %v747 = vadd.f32 %v728, %v746
        %748 = vdwg.mxu0
        %749 = vmatpush.bf16.msra.mxu0 %v538
        %750 = vmatpush.bf16.msra.mxu0 %v534
        %751 = vmatpush.bf16.msra.mxu0 %v530
        %752 = vmatpush.bf16.msra.mxu0 %v526
        %753 = vmatpush.bf16.msra.mxu0 %v522
        %754 = vmatpush.bf16.msra.mxu0 %v518
        %755 = vmatpush.bf16.msra.mxu0 %v514
        %756 = vmatpush.bf16.msra.mxu0 %v510
        %757 = vmatmul.bf16.gmra.mxu0 %v307
        %v758 = vpop.f32.mrf.mxu0
        %v759 = vadd.f32 0.0, %v758
        %v760 = vpop.f32.mrf.mxu0
        %v761 = vadd.f32 0.0, %v760
        %762 = vmatmul.bf16.gmra.mxu0 %v309
        %v763 = vpop.f32.mrf.mxu0
        %v764 = vadd.f32 0.0, %v763
        %v765 = vpop.f32.mrf.mxu0
        %v766 = vadd.f32 0.0, %v765
        %767 = vdwg.mxu0
        %768 = vmatpush.bf16.msra.mxu0 %v570
        %769 = vmatpush.bf16.msra.mxu0 %v566
        %770 = vmatpush.bf16.msra.mxu0 %v562
        %771 = vmatpush.bf16.msra.mxu0 %v558
        %772 = vmatpush.bf16.msra.mxu0 %v554
        %773 = vmatpush.bf16.msra.mxu0 %v550
        %774 = vmatpush.bf16.msra.mxu0 %v546
        %775 = vmatpush.bf16.msra.mxu0 %v542
        %776 = vmatmul.bf16.gmra.mxu0 %v308
        %v777 = vpop.f32.mrf.mxu0
        %v778 = vadd.f32 %v759, %v777
        %v779 = vpop.f32.mrf.mxu0
        %v780 = vadd.f32 %v761, %v779
        %781 = vmatmul.bf16.gmra.mxu0 %v310
        %v782 = vpop.f32.mrf.mxu0
        %v783 = vadd.f32 %v764, %v782
        %v784 = vpop.f32.mrf.mxu0
        %v785 = vadd.f32 %v766, %v784
        %786 = vdwg.mxu0
        %v787 = vmul.f32 %v664, %v664
        %v788 = vmul.f32 %v702, %v702
        %v789 = vmul.f32 %v666, %v666
        %v790 = vmul.f32 %v704, %v704
        %v791 = vmul.f32 %v669, %v669
        %v792 = vmul.f32 %v707, %v707
        %v793 = vmul.f32 %v671, %v671
        %v794 = vmul.f32 %v709, %v709
        %v795 = vmul.f32 %v740, %v740
        %v796 = vmul.f32 %v778, %v778
        %v797 = vmul.f32 %v742, %v742
        %v798 = vmul.f32 %v780, %v780
        %v799 = vmul.f32 %v745, %v745
        %v800 = vmul.f32 %v783, %v783
        %v801 = vmul.f32 %v747, %v747
        %v802 = vmul.f32 %v785, %v785
        %v803 = vadd.f32 %v787, %v795
        %v804 = vadd.f32 %v788, %v796
        %v805 = vadd.f32 %v789, %v797
        %v806 = vadd.f32 %v790, %v798
        %v807 = vadd.f32 %v791, %v799
        %v808 = vadd.f32 %v792, %v800
        %v809 = vadd.f32 %v793, %v801
        %v810 = vadd.f32 %v794, %v802
        %v811 = vrsqrt.pop %v803
        %v812 = vmul.f32 %v811, %v803
        %v813 = vmul.f32 %v812, %v811
        %v814 = vmul.f32 0.5, %v813
        %v815 = vsub.f32 1.5, %v814
        %v816 = vmul.f32 %v811, %v815
        %v817 = vmul.f32 %v803, %v816
        %vm818 = vcmp.eq.f32.partialorder %v803, inf
        %v819 = vsel %vm818, %v803, %v817
        %vm820 = vcmp.eq.f32.partialorder %v803, 0.0
        %v821 = vand.u32 %v803, 2147483648
        %v822 = vsel %vm820, %v821, %v819
        %v823 = vrsqrt.pop %v804
        %v824 = vmul.f32 %v823, %v804
        %v825 = vmul.f32 %v824, %v823
        %v826 = vmul.f32 0.5, %v825
        %v827 = vsub.f32 1.5, %v826
        %v828 = vmul.f32 %v823, %v827
        %v829 = vmul.f32 %v804, %v828
        %vm830 = vcmp.eq.f32.partialorder %v804, inf
        %v831 = vsel %vm830, %v804, %v829
        %vm832 = vcmp.eq.f32.partialorder %v804, 0.0
        %v833 = vand.u32 %v804, 2147483648
        %v834 = vsel %vm832, %v833, %v831
        %v835 = vrsqrt.pop %v805
        %v836 = vmul.f32 %v835, %v805
        %v837 = vmul.f32 %v836, %v835
        %v838 = vmul.f32 0.5, %v837
        %v839 = vsub.f32 1.5, %v838
        %v840 = vmul.f32 %v835, %v839
        %v841 = vmul.f32 %v805, %v840
        %vm842 = vcmp.eq.f32.partialorder %v805, inf
        %v843 = vsel %vm842, %v805, %v841
        %vm844 = vcmp.eq.f32.partialorder %v805, 0.0
        %v845 = vand.u32 %v805, 2147483648
        %v846 = vsel %vm844, %v845, %v843
        %v847 = vrsqrt.pop %v806
        %v848 = vmul.f32 %v847, %v806
        %v849 = vmul.f32 %v848, %v847
        %v850 = vmul.f32 0.5, %v849
        %v851 = vsub.f32 1.5, %v850
        %v852 = vmul.f32 %v847, %v851
        %v853 = vmul.f32 %v806, %v852
        %vm854 = vcmp.eq.f32.partialorder %v806, inf
        %v855 = vsel %vm854, %v806, %v853
        %vm856 = vcmp.eq.f32.partialorder %v806, 0.0
        %v857 = vand.u32 %v806, 2147483648
        %v858 = vsel %vm856, %v857, %v855
        %v859 = vrsqrt.pop %v807
        %v860 = vmul.f32 %v859, %v807
        %v861 = vmul.f32 %v860, %v859
        %v862 = vmul.f32 0.5, %v861
        %v863 = vsub.f32 1.5, %v862
        %v864 = vmul.f32 %v859, %v863
        %v865 = vmul.f32 %v807, %v864
        %vm866 = vcmp.eq.f32.partialorder %v807, inf
        %v867 = vsel %vm866, %v807, %v865
        %vm868 = vcmp.eq.f32.partialorder %v807, 0.0
        %v869 = vand.u32 %v807, 2147483648
        %v870 = vsel %vm868, %v869, %v867
        %v871 = vrsqrt.pop %v808
        %v872 = vmul.f32 %v871, %v808
        %v873 = vmul.f32 %v872, %v871
        %v874 = vmul.f32 0.5, %v873
        %v875 = vsub.f32 1.5, %v874
        %v876 = vmul.f32 %v871, %v875
        %v877 = vmul.f32 %v808, %v876
        %vm878 = vcmp.eq.f32.partialorder %v808, inf
        %v879 = vsel %vm878, %v808, %v877
        %vm880 = vcmp.eq.f32.partialorder %v808, 0.0
        %v881 = vand.u32 %v808, 2147483648
        %v882 = vsel %vm880, %v881, %v879
        %v883 = vrsqrt.pop %v809
        %v884 = vmul.f32 %v883, %v809
        %v885 = vmul.f32 %v884, %v883
        %v886 = vmul.f32 0.5, %v885
        %v887 = vsub.f32 1.5, %v886
        %v888 = vmul.f32 %v883, %v887
        %v889 = vmul.f32 %v809, %v888
        %vm890 = vcmp.eq.f32.partialorder %v809, inf
        %v891 = vsel %vm890, %v809, %v889
        %vm892 = vcmp.eq.f32.partialorder %v809, 0.0
        %v893 = vand.u32 %v809, 2147483648
        %v894 = vsel %vm892, %v893, %v891
        %v895 = vrsqrt.pop %v810
        %v896 = vmul.f32 %v895, %v810
        %v897 = vmul.f32 %v896, %v895
        %v898 = vmul.f32 0.5, %v897
        %v899 = vsub.f32 1.5, %v898
        %v900 = vmul.f32 %v895, %v899
        %v901 = vmul.f32 %v810, %v900
        %vm902 = vcmp.eq.f32.partialorder %v810, inf
        %v903 = vsel %vm902, %v810, %v901
        %vm904 = vcmp.eq.f32.partialorder %v810, 0.0
        %v905 = vand.u32 %v810, 2147483648
        %v906 = vsel %vm904, %v905, %v903
        %v907 = vld [vmem:[#allocation7] sm:$0xff]
        %v908 = vld [vmem:[#allocation7 + $0x8] sm:$0xff]
        %v909 = vld [vmem:[#allocation7 + $0x10] sm:$0xff]
        %v910 = vld [vmem:[#allocation7 + $0x18] sm:$0xff]
        %v911 = vld [vmem:[#allocation7 + $0x20] sm:$0xff]
        %v912 = vld [vmem:[#allocation7 + $0x28] sm:$0xff]
        %v913 = vld [vmem:[#allocation7 + $0x30] sm:$0xff]
        %v914 = vld [vmem:[#allocation7 + $0x38] sm:$0xff]
        %v915 = vld [vmem:[#allocation7 + $0x40] sm:$0xff]
        %v916 = vld [vmem:[#allocation7 + $0x48] sm:$0xff]
        %v917 = vld [vmem:[#allocation7 + $0x50] sm:$0xff]
        %v918 = vld [vmem:[#allocation7 + $0x58] sm:$0xff]
        %v919 = vld [vmem:[#allocation7 + $0x60] sm:$0xff]
        %v920 = vld [vmem:[#allocation7 + $0x68] sm:$0xff]
        %v921 = vld [vmem:[#allocation7 + $0x70] sm:$0xff]
        %v922 = vld [vmem:[#allocation7 + $0x78] sm:$0xff]
        %v923 = vld [vmem:[#allocation7 + $0x80] sm:$0xff]
        %v924 = vld [vmem:[#allocation7 + $0x88] sm:$0xff]
        %v925 = vld [vmem:[#allocation7 + $0x90] sm:$0xff]
        %v926 = vld [vmem:[#allocation7 + $0x98] sm:$0xff]
        %v927 = vld [vmem:[#allocation7 + $0xa0] sm:$0xff]
        %v928 = vld [vmem:[#allocation7 + $0xa8] sm:$0xff]
        %v929 = vld [vmem:[#allocation7 + $0xb0] sm:$0xff]
        %v930 = vld [vmem:[#allocation7 + $0xb8] sm:$0xff]
        %v931 = vld [vmem:[#allocation7 + $0xc0] sm:$0xff]
        %v932 = vld [vmem:[#allocation7 + $0xc8] sm:$0xff]
        %v933 = vld [vmem:[#allocation7 + $0xd0] sm:$0xff]
        %v934 = vld [vmem:[#allocation7 + $0xd8] sm:$0xff]
        %v935 = vld [vmem:[#allocation7 + $0xe0] sm:$0xff]
        %v936 = vld [vmem:[#allocation7 + $0xe8] sm:$0xff]
        %v937 = vld [vmem:[#allocation7 + $0xf0] sm:$0xff]
        %v938 = vld [vmem:[#allocation7 + $0xf8] sm:$0xff]
        %939 = vmatpush.msra.mxu0 %v922
        %940 = vmatpush.msra.mxu0 %v921
        %941 = vmatpush.msra.mxu0 %v920
        %942 = vmatpush.msra.mxu0 %v919
        %943 = vmatpush.msra.mxu0 %v918
        %944 = vmatpush.msra.mxu0 %v917
        %945 = vmatpush.msra.mxu0 %v916
        %946 = vmatpush.msra.mxu0 %v915
        %947 = vmatpush.msra.mxu0 %v914
        %948 = vmatpush.msra.mxu0 %v913
        %949 = vmatpush.msra.mxu0 %v912
        %950 = vmatpush.msra.mxu0 %v911
        %951 = vmatpush.msra.mxu0 %v910
        %952 = vmatpush.msra.mxu0 %v909
        %953 = vmatpush.msra.mxu0 %v908
        %954 = vmatpush.msra.mxu0 %v907
        %955 = vmatmul.f32.gmra.mxu0 %v822
        %v956 = vpop.f32.mrf.mxu0
        %v957 = vadd.f32 0.0, %v956
        %958 = vmatmul.f32.gmra.mxu0 %v846
        %v959 = vpop.f32.mrf.mxu0
        %v960 = vadd.f32 0.0, %v959
        %961 = vmatmul.f32.gmra.mxu0 %v870
        %v962 = vpop.f32.mrf.mxu0
        %v963 = vadd.f32 0.0, %v962
        %964 = vmatmul.f32.gmra.mxu0 %v894
        %v965 = vpop.f32.mrf.mxu0
        %v966 = vadd.f32 0.0, %v965
        %967 = vdwg.mxu0
        %968 = vmatpush.msra.mxu0 %v938
        %969 = vmatpush.msra.mxu0 %v937
        %970 = vmatpush.msra.mxu0 %v936
        %971 = vmatpush.msra.mxu0 %v935
        %972 = vmatpush.msra.mxu0 %v934
        %973 = vmatpush.msra.mxu0 %v933
        %974 = vmatpush.msra.mxu0 %v932
        %975 = vmatpush.msra.mxu0 %v931
        %976 = vmatpush.msra.mxu0 %v930
        %977 = vmatpush.msra.mxu0 %v929
        %978 = vmatpush.msra.mxu0 %v928
        %979 = vmatpush.msra.mxu0 %v927
        %980 = vmatpush.msra.mxu0 %v926
        %981 = vmatpush.msra.mxu0 %v925
        %982 = vmatpush.msra.mxu0 %v924
        %983 = vmatpush.msra.mxu0 %v923
        %984 = vmatmul.f32.gmra.mxu0 %v834
        %v985 = vpop.f32.mrf.mxu0
        %v986 = vadd.f32 %v957, %v985
        %987 = vmatmul.f32.gmra.mxu0 %v858
        %v988 = vpop.f32.mrf.mxu0
        %v989 = vadd.f32 %v960, %v988
        %990 = vmatmul.f32.gmra.mxu0 %v882
        %v991 = vpop.f32.mrf.mxu0
        %v992 = vadd.f32 %v963, %v991
        %993 = vmatmul.f32.gmra.mxu0 %v906
        %v994 = vpop.f32.mrf.mxu0
        %v995 = vadd.f32 %v966, %v994
        %996 = vdwg.mxu0
        %v997 = vmax.f32 %v986, 1e-05
        %v998 = vmax.f32 %v989, 1e-05
        %v999 = vmax.f32 %v992, 1e-05
        %v1000 = vmax.f32 %v995, 1e-05
        %v1001 = vlog2.pop %v997
        %v1002 = vmul.f32 %v1001, 0.6931472
        %v1003 = vlog2.pop %v998
        %v1004 = vmul.f32 %v1003, 0.6931472
        %v1005 = vlog2.pop %v999
        %v1006 = vmul.f32 %v1005, 0.6931472
        %v1007 = vlog2.pop %v1000
        %v1008 = vmul.f32 %v1007, 0.6931472
        %1009 = vst [vmem:[%s224] sm:$0xff] %v1002
        %1010 = vst [vmem:[%s224 + $0x8] sm:$0xff] %v1004
        %1011 = vst [vmem:[%s224 + $0x10] sm:$0xff] %v1006
        %1012 = vst [vmem:[%s224 + $0x18] sm:$0xff] %v1008
        %s1013 = sand.u32 %s97, 1
        %s1014 = scalar_lea.sflag [#allocation4], %s1013
        %s1015 = sand.u32 %s97, 1
        %s1016 = smul.addr %s1015, 32
        %s1017 = scalar_lea.vmem [#allocation8], %s1016
        // Predicated region
        $region45: #{tpu_custom_call.1} parent=31 // pred_check
          %p1018 = pneg %p107
        $region46: #{tpu_custom_call.1} parent=31 // pred_check_branch
          %1020 = sbr.rel (%p1018) target = $region48
        $region47: #{tpu_custom_call.1} parent=31 // pred_region
          %s1021 = smul.u32 4, %s21
          %1023 = vsyncadd %s1014, 0
          %s1024 = smul.addr %s1021, 8
          %s1025 = scalar_lea.hbm %s3, %s1024
          %s1026 = sshll.u32 %s1017, 4
          %s1027 = int_to_ptr.vmem [resolvable:$true] %s1026
          %s1028 = sshll.u32 %s1025, 4
          %s1029 = int_to_ptr.hbm [resolvable:$true] %s1028
          %1034 = dma.vmem_to_hbm [thread:$0]  %s1027, 512, %s1029, %s1014, 128, 128, 8
        $region48: #{tpu_custom_call.1} parent=31 // pred_fallthru
          _
      $region32: #{tpu_custom_call.1} parent=5 // pred_fallthru
        _
      %p1035 = scmp.le.s32.totalorder 2, %s16
      // Predicated region
      $region49: #{tpu_custom_call.1} parent=5 // pred_check
        %p1036 = pneg %p1035
      $region50: #{tpu_custom_call.1} parent=5 // pred_check_branch
        %1038 = sbr.rel (%p1036) target = $region52
      $region51: #{tpu_custom_call.1} parent=5 // pred_region
        %s1039 = ssub.s32 %s16, 2
        // Predicated region
        $region53: #{tpu_custom_call.1} parent=51 // pred_check
          %p1040 = pneg %p113
        $region54: #{tpu_custom_call.1} parent=51 // pred_check_branch
          %1042 = sbr.rel (%p1040) target = $region56
        $region55: #{tpu_custom_call.1} parent=51 // pred_region
          %s1043 = sand.u32 %s98, 1
          %s1044 = scalar_lea.sflag [#allocation4], %s1043
          %s1045 = sand.u32 %s98, 1
          %s1046 = smul.addr %s1045, 32
          %s1047 = scalar_lea.vmem [#allocation8], %s1046
          %1049 = dma.done %s1044, 512
        $region56: #{tpu_custom_call.1} parent=51 // pred_fallthru
          _
      $region52: #{tpu_custom_call.1} parent=5 // pred_fallthru
        _
    $region6: #{tpu_custom_call.1} parent=1 // loop_footer
      %s20 = sadd.s32 1, %s16
    $region7: #{tpu_custom_call.1} parent=1 // loop_footer_branch
      %15 = sbr.rel target = $region3
    $region8: #{tpu_custom_call.1} parent=1 // loop_exit
      _
    %1050 = vsyncpa [#allocation3], 1
    %s1051 = scalar_lea.sflag [#allocation3], 1
    %1052 = vsyncpa %s1051, 1
    %1053 = vsyncpa [#allocation6], 1
    %1054 = vsyncpa [#allocation4], 1
    %s1055 = scalar_lea.sflag [#allocation4], 1
    %1056 = vsyncpa %s1055, 1

</llo_original>
